<compile_context>
chip_gen: v7x
topology: tpu7x:2x2x1
jax: 0.10.0
libtpu: 0.0.40
codegen_flags: <defaults>
</compile_context>

<pallas_src>
import math
import jax
import jax.numpy as jnp
from jax.experimental import pallas as pl
from jax.experimental.pallas import tpu as pltpu


# --------------------------------------------------------------------------- #
# Kernels
# --------------------------------------------------------------------------- #
def support_kernel(x_ref, w_ref, sup_ref):
    """One row tile of  support = x @ w  (f32 compute, single cast to compute dtype)."""
    sup_ref[...] = jnp.dot(
        x_ref[...], w_ref[...], preferred_element_type=jnp.float32
    ).astype(sup_ref.dtype)


def gcn_agg_kernel(adj_ref, sup_ref, b_ref, out_ref):
    """One (row-tile i, contraction-tile k) step of  out = adj @ support + bias.

    The output block is k-invariant (same block index for every k), so it stays
    resident in VMEM across the contraction axis and serves as the f32 accumulator.
    """
    k = pl.program_id(1)

    @pl.when(k == 0)
    def _init():
        out_ref[...] = jnp.zeros_like(out_ref)

    out_ref[...] += jnp.dot(
        adj_ref[...], sup_ref[...], preferred_element_type=jnp.float32
    )

    @pl.when(k == pl.num_programs(1) - 1)
    def _finalize():
        out_ref[...] += b_ref[...]  # bias added exactly once, on the final step


# --------------------------------------------------------------------------- #
# Wrapper
# --------------------------------------------------------------------------- #
def _round_up(x, m):
    return ((x + m - 1) // m) * m


def _pick_tile(dim, candidates, min_blocks=1):
    for c in candidates:
        if dim % c == 0 and dim // c >= min_blocks:
            return c
    return candidates[-1]


def _vmem_estimate(tm, tk, f_out_pad, adj_bytes, adj_bufs=2):
    return (adj_bufs * tm * tk * adj_bytes          # adj stream (multi-buffered)
            + 2 * tk * f_out_pad * adj_bytes        # support stream (double-buffered)
            + 2 * tm * f_out_pad * 4                # f32 output block (+pipeline copy)
            + 2 * 1 * f_out_pad * 4)                # bias row


def graph_convolution(x, adj, weight, bias=None, *, compute_dtype=jnp.bfloat16):
    """x: [N, F_in], adj: [N, N] dense, weight: [F_in, F_out], bias: [F_out] or None.

    Returns f32 [N, F_out] = adj @ (x @ weight) + bias.
    compute_dtype controls the dtype of the streamed adj / support tiles
    (accumulation is always f32).
    """
    n, f_in = x.shape
    f_out = weight.shape[1]
    cd = jnp.dtype(compute_dtype)

    n_pad = _round_up(n, 128)
    f_out_pad = _round_up(f_out, 128)

    # ---- cheap pads (never rewrite the N^2 adjacency unless N is unaligned) ----
    x32 = x.astype(jnp.float32)
    if n_pad != n:
        x32 = jnp.zeros((n_pad, f_in), jnp.float32).at[:n].set(x32)
    w32 = weight.astype(jnp.float32)
    if f_out_pad != f_out:
        w32 = jnp.zeros((f_in, f_out_pad), jnp.float32).at[:, :f_out].set(w32)
    b32 = jnp.zeros((1, f_out_pad), jnp.float32)
    if bias is not None:
        b32 = b32.at[0, :f_out].set(bias.astype(jnp.float32))

    if n_pad == n:
        adj_c = adj.astype(cd)                      # no padded copy of the N^2 stream
    else:
        adj_c = jnp.zeros((n_pad, n_pad), cd).at[:n, :n].set(adj.astype(cd))

    # ---- tile selection (HBM-bound on adj: go as big as VMEM allows) ----
    tm = _pick_tile(n_pad, (512, 256, 128), min_blocks=2)   # >=2 row tiles when possible (megacore)
    max_tk = 4096 if cd.itemsize <= 2 else 2048
    tk_cands = tuple(t for t in (4096, 2048, 1024, 512, 256, 128) if t <= max_tk)
    tk = _pick_tile(n_pad, tk_cands)

    budget = 40 * 1024 * 1024  # conservative: double-buffered total fits v7x's 64 MiB VMEM
    while _vmem_estimate(tm, tk, f_out_pad, cd.itemsize) > budget and tk > 128:
        tk //= 2
    while _vmem_estimate(tm, tk, f_out_pad, cd.itemsize) > budget and tm > 128:
        tm //= 2

    k_steps = n_pad // tk
    adj_bufs = 2
    if k_steps >= 3 and _vmem_estimate(tm, tk, f_out_pad, cd.itemsize, adj_bufs=3) <= budget:
        adj_bufs = 3  # deeper prefetch on the only large stream

    est = _vmem_estimate(tm, tk, f_out_pad, cd.itemsize, adj_bufs)
    vmem_limit = int(min(48 * 1024 * 1024, max(32 * 1024 * 1024, 2 * est)))

    # ---- support = x @ w (small, one pass over N; output already padded/lane-dense) ----
    support = pl.pallas_call(
        support_kernel,
        out_shape=jax.ShapeDtypeStruct((n_pad, f_out_pad), cd),
        grid_spec=pltpu.PrefetchScalarGridSpec(
            num_scalar_prefetch=0,
            grid=(n_pad // tm,),
            in_specs=[
                pl.BlockSpec((tm, f_in), lambda i: (i, 0)),
                pl.BlockSpec((f_in, f_out_pad), lambda i: (0, 0)),
            ],
            out_specs=pl.BlockSpec((tm, f_out_pad), lambda i: (i, 0)),
        ),
        compiler_params=pltpu.CompilerParams(
            dimension_semantics=("parallel",),
        ),
    )(x32, w32)

    # ---- out = adj @ support + bias ----
    if adj_bufs == 3:
        adj_spec = pl.BlockSpec((tm, tk), lambda i, k: (i, k),
                                pipeline_mode=pl.Buffered(3))
    else:
        adj_spec = pl.BlockSpec((tm, tk), lambda i, k: (i, k))

    out = pl.pallas_call(
        gcn_agg_kernel,
        out_shape=jax.ShapeDtypeStruct((n_pad, f_out_pad), jnp.float32),
        grid_spec=pltpu.PrefetchScalarGridSpec(
            num_scalar_prefetch=0,
            grid=(n_pad // tm, n_pad // tk),
            in_specs=[
                adj_spec,                                               # adj tile
                pl.BlockSpec((tk, f_out_pad), lambda i, k: (k, 0)),     # support slab
                pl.BlockSpec((1, f_out_pad), lambda i, k: (0, 0)),      # bias row
            ],
            out_specs=pl.BlockSpec((tm, f_out_pad), lambda i, k: (i, 0)),
        ),
        compiler_params=pltpu.CompilerParams(
            dimension_semantics=("parallel", "arbitrary"),
            vmem_limit_bytes=vmem_limit,
        ),
    )(adj_c, support, b32)

    return out[:n, :f_out]


# --------------------------------------------------------------------------- #
# Example / self-test
# --------------------------------------------------------------------------- #
if __name__ == "__main__":
    # Module shapes: in_features -> out_features, N graph nodes.
    N, F_IN, F_OUT = 16, 8, 32

    key = jax.random.PRNGKey(0)
    k_x, k_adj, k_w, k_b = jax.random.split(key, 4)

    # Deterministic parameter init mirroring reset_parameters():
    # uniform(-stdv, stdv) with stdv = 1 / sqrt(out_features).
    stdv = 1.0 / math.sqrt(F_OUT)
    weight = jax.random.uniform(k_w, (F_IN, F_OUT), jnp.float32, -stdv, stdv)
    bias = jax.random.uniform(k_b, (F_OUT,), jnp.float32, -stdv, stdv)

    # Example inputs: features + a dense row-normalized adjacency with self-loops.
    x = jax.random.normal(k_x, (N, F_IN), jnp.float32)
    a = (jax.random.uniform(k_adj, (N, N)) > 0.7).astype(jnp.float32)
    a = jnp.clip(a + a.T + jnp.eye(N, dtype=jnp.float32), 0.0, 1.0)
    adj = a / jnp.sum(a, axis=1, keepdims=True)

    ref = adj @ (x @ weight) + bias

    # Exact-precision (f32) path.
    out_f32 = graph_convolution(x, adj, weight, bias, compute_dtype=jnp.float32)
    jax.block_until_ready(out_f32)
    assert out_f32.shape == (N, F_OUT)
    assert jnp.allclose(out_f32, ref, atol=1e-5, rtol=1e-5)

    # Default bandwidth-optimized bf16 path (f32 accumulation, looser tolerance).
    out_bf16 = graph_convolution(x, adj, weight, bias)
    jax.block_until_ready(out_bf16)
    assert out_bf16.shape == (N, F_OUT)
    assert jnp.allclose(out_bf16, ref, atol=3e-2, rtol=3e-2)

    print("KERNEL_OK")
</pallas_src>

<mosaic_0001>
module attributes {stable_mosaic.version = 11 : i64} {
  func.func @support_kernel(%arg0: i32, %arg1: memref<128x8xf32, #tpu.memory_space<vmem>>, %arg2: memref<8x128xf32, #tpu.memory_space<vmem>>, %arg3: memref<128x128xf32, #tpu.memory_space<vmem>>) attributes {dimension_semantics = [#tpu.dimension_semantics<parallel>], iteration_bounds = array<i64: 1>, scalar_prefetch = 0 : i64, scratch_operands = 0 : i64, tpu.core_type = #tpu.core_type<tc>, window_params = [{transform_indices = @transform_0, window_bounds = array<i64: 128, 8>}, {pipeline_mode = #tpu.pipeline_mode<synchronous>, transform_indices = @transform_1, window_bounds = array<i64: 8, 128>}, {transform_indices = @transform_2, window_bounds = array<i64: 128, 128>}]} {
    %c0 = arith.constant 0 : index
    %c0_0 = arith.constant 0 : index
    %0 = vector.load %arg1[%c0, %c0_0] : memref<128x8xf32, #tpu.memory_space<vmem>>, vector<128x8xf32>
    %c0_1 = arith.constant 0 : index
    %c0_2 = arith.constant 0 : index
    %1 = vector.load %arg2[%c0_1, %c0_2] : memref<8x128xf32, #tpu.memory_space<vmem>>, vector<8x128xf32>
    %cst = arith.constant dense<0.000000e+00> : vector<128x128xf32>
    %2 = tpu.matmul %0, %1, %cst {dimension_numbers = #tpu.dot_dimension_numbers<[1], [0], [0], [1], [0, 0, 1, 1], [], []>} : vector<128x8xf32>, vector<8x128xf32>, vector<128x128xf32> -> vector<128x128xf32>
    %c0_3 = arith.constant 0 : index
    %c0_4 = arith.constant 0 : index
    %3 = vector.load %arg3[%c0_3, %c0_4] : memref<128x128xf32, #tpu.memory_space<vmem>>, vector<128x128xf32>
    tpu.vector_store %arg3[%c0_3, %c0_4], %2 {strides = array<i32>} : memref<128x128xf32, #tpu.memory_space<vmem>>, vector<128x128xf32>,
    return
  }
  func.func @transform_0(%arg0: i32) -> (i32, i32) {
    %c0_i32 = arith.constant 0 : i32
    %c0_i32_0 = arith.constant 0 : i32
    return %arg0, %c0_i32 : i32, i32
  }
  func.func @transform_1(%arg0: i32) -> (i32, i32) {
    %c0_i32 = arith.constant 0 : i32
    %c0_i32_0 = arith.constant 0 : i32
    %c0_i32_1 = arith.constant 0 : i32
    return %c0_i32, %c0_i32_0 : i32, i32
  }
  func.func @transform_2(%arg0: i32) -> (i32, i32) {
    %c0_i32 = arith.constant 0 : i32
    %c0_i32_0 = arith.constant 0 : i32
    return %arg0, %c0_i32 : i32, i32
  }
}

</mosaic_0001>

<llo_original>
// kernel: tpu_custom_call.1
$region0: #{tpu_custom_call.1}
  #allocation0 [shape = 'u32[]', space=smem, size = 0x4, offset = 0x4, fixed_abs, tag = 'smem constant byte address 0x4 - core index']
  #allocation1 [shape = 'u32[144,128]{1,0:T(1,128)}', space=vmem, size = 0x12000, scoped, tag = 'internal scratch']
  %s0 = inlined_call_operand.vmem [shape: f32[128,8], index: 0, kind: input, shape index: {}]
  %s1 = inlined_call_operand.vmem [shape: f32[8,128], index: 1, kind: input, shape index: {}]
  %s2 = inlined_call_operand.hbm [shape: f32[128,128], index: 2, kind: output, shape index: {}]
  %s3 = sld [smem:[#allocation0]]
  $region18: #{tpu_custom_call.1} parent=0
    _
  %s5 = ssub.s32 1, %s3
  %s6 = scalar_select 0, %s5, %s3
  $region1: #{tpu_custom_call.1} parent=0
    #allocation2 [shape = 'u8[65536]{0}', space=vmem, size = 0x10000, scoped, tag = 'output window, operand 0, single buffered']
    #allocation3 [shape = 's32[1]{0}', space=sflag, size = 0x4, scoped, tag = 'scoped memory for tpu_custom_call.1']
    %7 = vsyncpa [#allocation3], 0
    // Predicated region
    $region2: #{tpu_custom_call.1} parent=1 // pred_check
      _
    $region3: #{tpu_custom_call.1} parent=1 // pred_check_branch
      %9 = sbr.rel (0) target = $region5
    $region4: #{tpu_custom_call.1} parent=1 // pred_region
      _
    $region5: #{tpu_custom_call.1} parent=1 // pred_fallthru
      _
    // Predicated region
    $region6: #{tpu_custom_call.1} parent=1 // pred_check
      _
    $region7: #{tpu_custom_call.1} parent=1 // pred_check_branch
      %11 = sbr.rel (0) target = $region9
    $region8: #{tpu_custom_call.1} parent=1 // pred_region
      _
    $region9: #{tpu_custom_call.1} parent=1 // pred_fallthru
      _
    %v12 = vld [vmem:[%s0] sm:$0xff]
    %v13 = vld [vmem:[%s0 + $0x8] sm:$0xff]
    %v14 = vld [vmem:[%s0 + $0x10] sm:$0xff]
    %v15 = vld [vmem:[%s0 + $0x18] sm:$0xff]
    %v16 = vld [vmem:[%s0 + $0x20] sm:$0xff]
    %v17 = vld [vmem:[%s0 + $0x28] sm:$0xff]
    %v18 = vld [vmem:[%s0 + $0x30] sm:$0xff]
    %v19 = vld [vmem:[%s0 + $0x38] sm:$0xff]
    %v20 = vld [vmem:[%s0 + $0x40] sm:$0xff]
    %v21 = vld [vmem:[%s0 + $0x48] sm:$0xff]
    %v22 = vld [vmem:[%s0 + $0x50] sm:$0xff]
    %v23 = vld [vmem:[%s0 + $0x58] sm:$0xff]
    %v24 = vld [vmem:[%s0 + $0x60] sm:$0xff]
    %v25 = vld [vmem:[%s0 + $0x68] sm:$0xff]
    %v26 = vld [vmem:[%s0 + $0x70] sm:$0xff]
    %v27 = vld [vmem:[%s0 + $0x78] sm:$0xff]
    %v28 = vld [vmem:[%s1] sm:$0xff]
    %vm29 = vcmask 64512
    %v31 = vsel %vm29, %v12, 0
    %v34 = vsel %vm29, %v13, 0
    %v37 = vsel %vm29, %v14, 0
    %v40 = vsel %vm29, %v15, 0
    %v43 = vsel %vm29, %v16, 0
    %v46 = vsel %vm29, %v17, 0
    %v49 = vsel %vm29, %v18, 0
    %v52 = vsel %vm29, %v19, 0
    %v55 = vsel %vm29, %v20, 0
    %v58 = vsel %vm29, %v21, 0
    %v61 = vsel %vm29, %v22, 0
    %v64 = vsel %vm29, %v23, 0
    %v67 = vsel %vm29, %v24, 0
    %v70 = vsel %vm29, %v25, 0
    %v73 = vsel %vm29, %v26, 0
    %v76 = vsel %vm29, %v27, 0
    %78 = vmatprep.subr.mxu0 0.0
    %79 = vmatpush1.msra.mxu0 %v28
    %80 = vmatprep.subr.mxu0 0.0
    %81 = vmatpush1.msra.mxu0 0.0
    %82 = vmatprep.subr.mxu0 0.0
    %83 = vmatpush1.msra.mxu0 0.0
    %84 = vmatprep.subr.mxu0 0.0
    %85 = vmatpush1.msra.mxu0 0.0
    %86 = vmatprep.subr.mxu0 0.0
    %87 = vmatpush1.msra.mxu0 0.0
    %88 = vmatprep.subr.mxu0 0.0
    %89 = vmatpush1.msra.mxu0 0.0
    %90 = vmatprep.subr.mxu0 0.0
    %91 = vmatpush1.msra.mxu0 0.0
    %92 = vmatprep.subr.mxu0 0.0
    %93 = vmatpush1.msra.mxu0 0.0
    %94 = vmatprep.subr.mxu0 0.0
    %95 = vmatpush1.msra.mxu0 0.0
    %96 = vmatprep.subr.mxu0 0.0
    %97 = vmatpush1.msra.mxu0 0.0
    %98 = vmatprep.subr.mxu0 0.0
    %99 = vmatpush1.msra.mxu0 0.0
    %100 = vmatprep.subr.mxu0 0.0
    %101 = vmatpush1.msra.mxu0 0.0
    %102 = vmatprep.subr.mxu0 0.0
    %103 = vmatpush1.msra.mxu0 0.0
    %104 = vmatprep.subr.mxu0 0.0
    %105 = vmatpush1.msra.mxu0 0.0
    %106 = vmatprep.subr.mxu0 0.0
    %107 = vmatpush1.msra.mxu0 0.0
    %108 = vmatprep.subr.mxu0 0.0
    %109 = vmatpush1.msra.mxu0 0.0
    %110 = vmatprep.subr.mxu0 0.0
    %111 = vmatpush1.msra.mxu0 0.0
    %112 = vmatprep.subr.mxu0 0.0
    %113 = vmatpush1.msra.mxu0 0.0
    %114 = vmatprep.subr.mxu0 0.0
    %115 = vmatpush1.msra.mxu0 0.0
    %116 = vmatprep.subr.mxu0 0.0
    %117 = vmatpush1.msra.mxu0 0.0
    %118 = vmatprep.subr.mxu0 0.0
    %119 = vmatpush1.msra.mxu0 0.0
    %120 = vmatprep.subr.mxu0 0.0
    %121 = vmatpush1.msra.mxu0 0.0
    %122 = vmatprep.subr.mxu0 0.0
    %123 = vmatpush1.msra.mxu0 0.0
    %124 = vmatprep.subr.mxu0 0.0
    %125 = vmatpush1.msra.mxu0 0.0
    %126 = vmatprep.subr.mxu0 0.0
    %127 = vmatpush1.msra.mxu0 0.0
    %128 = vmatprep.subr.mxu0 0.0
    %129 = vmatpush1.msra.mxu0 0.0
    %130 = vmatprep.subr.mxu0 0.0
    %131 = vmatpush1.msra.mxu0 0.0
    %132 = vmatprep.subr.mxu0 0.0
    %133 = vmatpush1.msra.mxu0 0.0
    %134 = vmatprep.subr.mxu0 0.0
    %135 = vmatpush1.msra.mxu0 0.0
    %136 = vmatprep.subr.mxu0 0.0
    %137 = vmatpush1.msra.mxu0 0.0
    %138 = vmatprep.subr.mxu0 0.0
    %139 = vmatpush1.msra.mxu0 0.0
    %140 = vmatprep.subr.mxu0 0.0
    %141 = vmatpush1.msra.mxu0 0.0
    %142 = vmatprep.mubr.f32.mxu0 0.0
    %143 = vmatmul.mubr.f32.gmra.mrb[0].mxu0 %v31
    %v144 = vpop.f32.mrb[0].mxu0
    %v145 = vadd.f32 0.0, %v144
    %v146 = vpop.f32.mrb[0].mxu0
    %147 = vmatprep.mubr.f32.mxu0 0.0
    %148 = vmatmul.mubr.f32.gmra.mrb[0].mxu0 %v34
    %v149 = vpop.f32.mrb[0].mxu0
    %v150 = vadd.f32 0.0, %v149
    %v151 = vpop.f32.mrb[0].mxu0
    %152 = vmatprep.mubr.f32.mxu0 0.0
    %153 = vmatmul.mubr.f32.gmra.mrb[0].mxu0 %v37
    %v154 = vpop.f32.mrb[0].mxu0
    %v155 = vadd.f32 0.0, %v154
    %v156 = vpop.f32.mrb[0].mxu0
    %157 = vmatprep.mubr.f32.mxu0 0.0
    %158 = vmatmul.mubr.f32.gmra.mrb[0].mxu0 %v40
    %v159 = vpop.f32.mrb[0].mxu0
    %v160 = vadd.f32 0.0, %v159
    %v161 = vpop.f32.mrb[0].mxu0
    %162 = vmatprep.mubr.f32.mxu0 0.0
    %163 = vmatmul.mubr.f32.gmra.mrb[0].mxu0 %v43
    %v164 = vpop.f32.mrb[0].mxu0
    %v165 = vadd.f32 0.0, %v164
    %v166 = vpop.f32.mrb[0].mxu0
    %167 = vmatprep.mubr.f32.mxu0 0.0
    %168 = vmatmul.mubr.f32.gmra.mrb[0].mxu0 %v46
    %v169 = vpop.f32.mrb[0].mxu0
    %v170 = vadd.f32 0.0, %v169
    %v171 = vpop.f32.mrb[0].mxu0
    %172 = vmatprep.mubr.f32.mxu0 0.0
    %173 = vmatmul.mubr.f32.gmra.mrb[0].mxu0 %v49
    %v174 = vpop.f32.mrb[0].mxu0
    %v175 = vadd.f32 0.0, %v174
    %v176 = vpop.f32.mrb[0].mxu0
    %177 = vmatprep.mubr.f32.mxu0 0.0
    %178 = vmatmul.mubr.f32.gmra.mrb[0].mxu0 %v52
    %v179 = vpop.f32.mrb[0].mxu0
    %v180 = vadd.f32 0.0, %v179
    %v181 = vpop.f32.mrb[0].mxu0
    %182 = vmatprep.mubr.f32.mxu0 0.0
    %183 = vmatmul.mubr.f32.gmra.mrb[0].mxu0 %v55
    %v184 = vpop.f32.mrb[0].mxu0
    %v185 = vadd.f32 0.0, %v184
    %v186 = vpop.f32.mrb[0].mxu0
    %187 = vmatprep.mubr.f32.mxu0 0.0
    %188 = vmatmul.mubr.f32.gmra.mrb[0].mxu0 %v58
    %v189 = vpop.f32.mrb[0].mxu0
    %v190 = vadd.f32 0.0, %v189
    %v191 = vpop.f32.mrb[0].mxu0
    %192 = vmatprep.mubr.f32.mxu0 0.0
    %193 = vmatmul.mubr.f32.gmra.mrb[0].mxu0 %v61
    %v194 = vpop.f32.mrb[0].mxu0
    %v195 = vadd.f32 0.0, %v194
    %v196 = vpop.f32.mrb[0].mxu0
    %197 = vmatprep.mubr.f32.mxu0 0.0
    %198 = vmatmul.mubr.f32.gmra.mrb[0].mxu0 %v64
    %v199 = vpop.f32.mrb[0].mxu0
    %v200 = vadd.f32 0.0, %v199
    %v201 = vpop.f32.mrb[0].mxu0
    %202 = vmatprep.mubr.f32.mxu0 0.0
    %203 = vmatmul.mubr.f32.gmra.mrb[0].mxu0 %v67
    %v204 = vpop.f32.mrb[0].mxu0
    %v205 = vadd.f32 0.0, %v204
    %v206 = vpop.f32.mrb[0].mxu0
    %207 = vmatprep.mubr.f32.mxu0 0.0
    %208 = vmatmul.mubr.f32.gmra.mrb[0].mxu0 %v70
    %v209 = vpop.f32.mrb[0].mxu0
    %v210 = vadd.f32 0.0, %v209
    %v211 = vpop.f32.mrb[0].mxu0
    %212 = vmatprep.mubr.f32.mxu0 0.0
    %213 = vmatmul.mubr.f32.gmra.mrb[0].mxu0 %v73
    %v214 = vpop.f32.mrb[0].mxu0
    %v215 = vadd.f32 0.0, %v214
    %v216 = vpop.f32.mrb[0].mxu0
    %217 = vmatprep.mubr.f32.mxu0 0.0
    %218 = vmatmul.mubr.f32.gmra.mrb[0].mxu0 %v76
    %v219 = vpop.f32.mrb[0].mxu0
    %v220 = vadd.f32 0.0, %v219
    %v221 = vpop.f32.mrb[0].mxu0
    %222 = vdwg.mxu0
    %223 = vst [vmem:[#allocation2] sm:$0xff] %v145
    %224 = vst [vmem:[#allocation2 + $0x8] sm:$0xff] %v150
    %225 = vst [vmem:[#allocation2 + $0x10] sm:$0xff] %v155
    %226 = vst [vmem:[#allocation2 + $0x18] sm:$0xff] %v160
    %227 = vst [vmem:[#allocation2 + $0x20] sm:$0xff] %v165
    %228 = vst [vmem:[#allocation2 + $0x28] sm:$0xff] %v170
    %229 = vst [vmem:[#allocation2 + $0x30] sm:$0xff] %v175
    %230 = vst [vmem:[#allocation2 + $0x38] sm:$0xff] %v180
    %231 = vst [vmem:[#allocation2 + $0x40] sm:$0xff] %v185
    %232 = vst [vmem:[#allocation2 + $0x48] sm:$0xff] %v190
    %233 = vst [vmem:[#allocation2 + $0x50] sm:$0xff] %v195
    %234 = vst [vmem:[#allocation2 + $0x58] sm:$0xff] %v200
    %235 = vst [vmem:[#allocation2 + $0x60] sm:$0xff] %v205
    %236 = vst [vmem:[#allocation2 + $0x68] sm:$0xff] %v210
    %237 = vst [vmem:[#allocation2 + $0x70] sm:$0xff] %v215
    %238 = vst [vmem:[#allocation2 + $0x78] sm:$0xff] %v220
    // Predicated region
    $region10: #{tpu_custom_call.1} parent=1 // pred_check
      _
    $region11: #{tpu_custom_call.1} parent=1 // pred_check_branch
      %240 = sbr.rel (0) target = $region13
    $region12: #{tpu_custom_call.1} parent=1 // pred_region
      %s242 = ssub.s32 2048, 2048
      %243 = vsyncadd [#allocation3], %s242
      %s244 = sshll.u32 [#allocation2], 4
      %s245 = int_to_ptr.vmem [resolvable:$true] %s244
      %250 = dma.vmem_to_hbm [thread:$0]  %s245, 2048, %s2, [#allocation3], 128, 128, 8
    $region13: #{tpu_custom_call.1} parent=1 // pred_fallthru
      _
    // Predicated region
    $region14: #{tpu_custom_call.1} parent=1 // pred_check
      _
    $region15: #{tpu_custom_call.1} parent=1 // pred_check_branch
      %252 = sbr.rel (0) target = $region17
    $region16: #{tpu_custom_call.1} parent=1 // pred_region
      %253 = dma.done [#allocation3], 2048
    $region17: #{tpu_custom_call.1} parent=1 // pred_fallthru
      _
    %254 = vsyncpa [#allocation3], 1

</llo_original>
